<compile_context>
chip_gen: v6e
topology: v6e:2x2x1
jax: 0.10.0
libtpu: 0.0.40
codegen_flags: <defaults>
</compile_context>

<pallas_src>
import functools

import jax
import jax.numpy as jnp
import numpy as np
from jax import lax
from jax.experimental import pallas as pl
from jax.experimental.pallas import tpu as pltpu


def _sor_kernel(params_ref, f_ref, u_ref, out_ref, *, plane_h):
    omega = params_ref[0]
    h2_over_4 = params_ref[1]

    x = u_ref[...]        # (W, L) with L = TB * plane_h (TB planes packed on lanes)
    fx = f_ref[...]
    Wd, L = x.shape
    H = plane_h

    # ---- sweep-invariant masks / terms (hoisted out of the 4 sweeps) ----
    row = lax.broadcasted_iota(jnp.int32, (Wd, L), 0)
    col = lax.broadcasted_iota(jnp.int32, (Wd, L), 1)
    lcol = col % H                                   # within-plane column index
    interior = (row >= 1) & (row <= Wd - 2) & (lcol >= 1) & (lcol <= H - 2)
    row_odd = (row & 1) == 1
    # H is even, so global column parity == within-plane column parity.
    col_odd = (col & 1) == 1

    mask_oo = interior & row_odd & col_odd
    mask_oe = interior & row_odd & jnp.logical_not(col_odd)
    mask_eo = interior & jnp.logical_not(row_odd) & col_odd
    mask_ee = interior & jnp.logical_not(row_odd) & jnp.logical_not(col_odd)

    # forcing term omega * h^2/4 * f, computed once
    c = (omega * h2_over_4) * fx

    def sweep(x, mask):
        # 5-point SOR stencil: 1/4*(up+down+left+right) - center.
        # pltpu.roll requires non-negative shifts; shift -1 == size-1 (circular).
        up    = pltpu.roll(x, 1, axis=0)
        down  = pltpu.roll(x, Wd - 1, axis=0)
        left  = pltpu.roll(x, 1, axis=1)
        right = pltpu.roll(x, L - 1, axis=1)
        stencil = 0.25 * (up + down + left + right) - x
        delta = omega * stencil - c
        return x + jnp.where(mask, delta, jnp.zeros_like(delta))

    # Sequential Gauss-Seidel order, identical to the PyTorch in-place updates:
    # (odd,odd) -> (odd,even) -> (even,odd) -> (even,even)
    x = sweep(x, mask_oo)
    x = sweep(x, mask_oe)
    x = sweep(x, mask_eo)
    x = sweep(x, mask_ee)

    # update_DB: u[:, :, :, -1] = 0  (last column of each plane)
    x = jnp.where(lcol == H - 1, jnp.zeros_like(x), x)

    # update_NB (sequential in-place semantics):
    # u[0,:] = u[1,:]
    x = jnp.where(row == 0, jnp.broadcast_to(x[1:2, :], (Wd, L)), x)
    # u[:,0] = u[:,1] per plane: column k*H takes the value of column k*H + 1
    nxt = pltpu.roll(x, L - 1, axis=1)
    x = jnp.where(lcol == 0, nxt, x)
    # u[-1,:] = u[-2,:]
    x = jnp.where(row == Wd - 1, jnp.broadcast_to(x[Wd - 2:Wd - 1, :], (Wd, L)), x)

    out_ref[...] = x


def _pick_block_batch(B, H, plane_bytes, budget_bytes=8 << 20):
    """Number of batch planes packed per grid step along the lane axis.

    Lane-axis block widths must either span the whole packed axis (TB == B) or
    be a multiple of 128 lanes (TPU block constraint).
    """
    def fits(tb):
        # f, u, out blocks, each double-buffered by the pipeline.
        return 6 * tb * plane_bytes <= budget_bytes

    if fits(B):
        tb = B
        # v7x megacore: prefer >=2 parallel grid steps when the lane constraint allows it.
        if B % 2 == 0 and ((B // 2) * H) % 128 == 0 and fits(B // 2):
            tb = B // 2
        return tb
    for tb in range(B - 1, 0, -1):
        if B % tb == 0 and (tb * H) % 128 == 0 and fits(tb):
            return tb
    # TODO(synk): for planes too large for even a single-plane block, tile over W
    # (sublane axis) with a 1-row halo instead of packing whole planes.
    return B


def sor2d_update(f, dbc, nbc, u, omega, h):
    """JAX/Pallas equivalent of SOR2dUpdate.forward.

    f, dbc, nbc, u: (B, 1, W, H).  dbc/nbc are accepted but unused (as in the
    PyTorch reference, which only uses them as placeholders).
    Returns the updated u, shape (B, 1, W, H).
    """
    del dbc, nbc
    B, C, W, H = u.shape
    assert C == 1
    assert W % 2 == 0 and H % 2 == 0, "even spatial dims required (as in the PyTorch module)"

    params = jnp.array([omega, (h ** 2) / 4.0], dtype=jnp.float32)

    # Lane-dense layout: pack batch planes along the lane axis -> (W, B*H).
    f2 = jnp.transpose(f.reshape(B, W, H).astype(jnp.float32), (1, 0, 2)).reshape(W, B * H)
    u2 = jnp.transpose(u.reshape(B, W, H).astype(jnp.float32), (1, 0, 2)).reshape(W, B * H)

    TB = _pick_block_batch(B, H, W * H * 4)
    L = TB * H
    grid = (B // TB,)

    kernel = functools.partial(_sor_kernel, plane_h=H)

    out = pl.pallas_call(
        kernel,
        out_shape=jax.ShapeDtypeStruct((W, B * H), jnp.float32),
        grid=grid,
        in_specs=[
            pl.BlockSpec(memory_space=pltpu.MemorySpace.SMEM),   # [omega, h^2/4]
            pl.BlockSpec((W, L), lambda b: (0, b)),              # f (packed)
            pl.BlockSpec((W, L), lambda b: (0, b)),              # u (packed)
        ],
        out_specs=pl.BlockSpec((W, L), lambda b: (0, b)),
        input_output_aliases={2: 0},                             # in-place on u (like PyTorch)
        compiler_params=pltpu.CompilerParams(
            dimension_semantics=("parallel",),
            vmem_limit_bytes=32 * 1024 * 1024,
        ),
    )(params, f2, u2)

    out = jnp.transpose(out.reshape(W, B, H), (1, 0, 2)).reshape(B, 1, W, H)
    return out.astype(u.dtype)


def _sor2d_reference(f, dbc, nbc, u, omega, h):
    """Direct numpy transcription of the PyTorch forward (for validation)."""
    del dbc, nbc
    u = np.array(u, dtype=np.float64).copy()
    f = np.array(f, dtype=np.float64)

    def fconv(x):
        B, _, W, H = x.shape
        ow = (W - 3) // 2 + 1
        oh = (H - 3) // 2 + 1
        out = np.zeros((B, 1, ow, oh), dtype=np.float64)
        for i in range(ow):
            for j in range(oh):
                r, c = 2 * i + 1, 2 * j + 1
                out[:, :, i, j] = 0.25 * (x[:, :, r - 1, c] + x[:, :, r, c - 1]
                                          + x[:, :, r, c + 1] + x[:, :, r + 1, c]) - x[:, :, r, c]
        return out

    h2_4 = h * h / 4.0
    u[:, :, 1:-1:2, 1:-1:2] += omega * (fconv(u) - h2_4 * f[:, :, 1:-1:2, 1:-1:2])
    u[:, :, 1:-1:2, 2::2] += omega * (fconv(u[:, :, :, 1:]) - h2_4 * f[:, :, 1:-1:2, 2::2])
    u[:, :, 2::2, 1:-1:2] += omega * (fconv(u[:, :, 1:, :]) - h2_4 * f[:, :, 2::2, 1:-1:2])
    u[:, :, 2::2, 2::2] += omega * (fconv(u[:, :, 1:, 1:]) - h2_4 * f[:, :, 2::2, 2::2])
    u[:, :, :, -1] = 0
    u[:, :, 0, :] = u[:, :, 1, :]
    u[:, :, :, 0] = u[:, :, :, 1]
    u[:, :, -1, :] = u[:, :, -2, :]
    return u


if __name__ == "__main__":
    # Deterministic parameters (module __init__ args): h = grid spacing, omega = relaxation.
    B, W, H = 2, 16, 16
    omega = 1.5
    h = 1.0 / (W - 1)

    key = jax.random.PRNGKey(0)
    kf, ku, kd, kn = jax.random.split(key, 4)
    f = jax.random.normal(kf, (B, 1, W, H), dtype=jnp.float32)
    u = jax.random.normal(ku, (B, 1, W, H), dtype=jnp.float32)
    dbc = jax.random.normal(kd, (B, 1, W, H), dtype=jnp.float32)
    nbc = jax.random.normal(kn, (B, 1, W, H), dtype=jnp.float32)

    out = sor2d_update(f, dbc, nbc, u, omega, h)
    out = jax.block_until_ready(out)

    ref = _sor2d_reference(np.asarray(f), np.asarray(dbc), np.asarray(nbc),
                           np.asarray(u), omega, h)
    np.testing.assert_allclose(np.asarray(out), ref, rtol=1e-4, atol=1e-5)

    print("KERNEL_OK")
</pallas_src>

<mosaic_0001>
module attributes {stable_mosaic.version = 11 : i64} {
  func.func @_sor_kernel(%arg0: i32, %arg1: memref<2xf32, #tpu.memory_space<smem>>, %arg2: memref<16x32xf32, #tpu.memory_space<vmem>>, %arg3: memref<16x32xf32, #tpu.memory_space<vmem>>, %arg4: memref<16x32xf32, #tpu.memory_space<vmem>>) attributes {dimension_semantics = [#tpu.dimension_semantics<parallel>], iteration_bounds = array<i64: 1>, scalar_prefetch = 0 : i64, scratch_operands = 0 : i64, tpu.core_type = #tpu.core_type<tc>, window_params = [{transform_indices = @transform_0, window_bounds = array<i64: 2>}, {transform_indices = @transform_1, window_bounds = array<i64: 16, 32>}, {transform_indices = @transform_2, window_bounds = array<i64: 16, 32>}, {transform_indices = @transform_3, window_bounds = array<i64: 16, 32>}]} {
    %c0 = arith.constant 0 : index
    %0 = memref.load %arg1[%c0] : memref<2xf32, #tpu.memory_space<smem>>
    %c1 = arith.constant 1 : index
    %1 = memref.load %arg1[%c1] : memref<2xf32, #tpu.memory_space<smem>>
    %c0_0 = arith.constant 0 : index
    %c0_1 = arith.constant 0 : index
    %2 = vector.load %arg3[%c0_0, %c0_1] : memref<16x32xf32, #tpu.memory_space<vmem>>, vector<16x32xf32>
    %c0_2 = arith.constant 0 : index
    %c0_3 = arith.constant 0 : index
    %3 = vector.load %arg2[%c0_2, %c0_3] : memref<16x32xf32, #tpu.memory_space<vmem>>, vector<16x32xf32>
    %4 = tpu.iota {dimensions = array<i32: 0>} : vector<16x32xi32>
    %5 = tpu.iota {dimensions = array<i32: 1>} : vector<16x32xi32>
    %c16_i32 = arith.constant 16 : i32
    %c0_i32 = arith.constant 0 : i32
    %6 = arith.cmpi eq, %c16_i32, %c0_i32 : i32
    %c1_i32 = arith.constant 1 : i32
    %7 = arith.select %6, %c1_i32, %c16_i32 : i32
    %8 = vector.broadcast %7 : i32 to vector<16x32xi32>
    %9 = arith.remsi %5, %8 : vector<16x32xi32>
    %c0_i32_4 = arith.constant 0 : i32
    %10 = vector.broadcast %c0_i32_4 : i32 to vector<16x32xi32>
    %11 = arith.cmpi ne, %9, %10 : vector<16x32xi32>
    %c0_i32_5 = arith.constant 0 : i32
    %12 = vector.broadcast %c0_i32_5 : i32 to vector<16x32xi32>
    %13 = arith.cmpi slt, %9, %12 : vector<16x32xi32>
    %c0_i32_6 = arith.constant 0 : i32
    %14 = arith.cmpi slt, %7, %c0_i32_6 : i32
    %15 = vector.broadcast %14 : i1 to vector<16x32xi1>
    %16 = vector.broadcast %15 : vector<16x32xi1> to vector<16x32xi1>
    %17 = arith.xori %13, %16 : vector<16x32xi1>
    %18 = arith.andi %17, %11 : vector<16x32xi1>
    %19 = vector.broadcast %7 : i32 to vector<16x32xi32>
    %20 = arith.addi %9, %19 : vector<16x32xi32>
    %21 = arith.select %18, %20, %9 : vector<16x32xi1>, vector<16x32xi32>
    %c1_i32_7 = arith.constant 1 : i32
    %22 = vector.broadcast %c1_i32_7 : i32 to vector<16x32xi32>
    %23 = arith.cmpi sge, %4, %22 : vector<16x32xi32>
    %c14_i32 = arith.constant 14 : i32
    %24 = vector.broadcast %c14_i32 : i32 to vector<16x32xi32>
    %25 = arith.cmpi sle, %4, %24 : vector<16x32xi32>
    %26 = arith.andi %23, %25 : vector<16x32xi1>
    %c1_i32_8 = arith.constant 1 : i32
    %27 = vector.broadcast %c1_i32_8 : i32 to vector<16x32xi32>
    %28 = arith.cmpi sge, %21, %27 : vector<16x32xi32>
    %29 = arith.andi %26, %28 : vector<16x32xi1>
    %c14_i32_9 = arith.constant 14 : i32
    %30 = vector.broadcast %c14_i32_9 : i32 to vector<16x32xi32>
    %31 = arith.cmpi sle, %21, %30 : vector<16x32xi32>
    %32 = arith.andi %29, %31 : vector<16x32xi1>
    %c1_i32_10 = arith.constant 1 : i32
    %33 = vector.broadcast %c1_i32_10 : i32 to vector<16x32xi32>
    %34 = arith.andi %4, %33 : vector<16x32xi32>
    %c1_i32_11 = arith.constant 1 : i32
    %35 = vector.broadcast %c1_i32_11 : i32 to vector<16x32xi32>
    %36 = arith.cmpi eq, %34, %35 : vector<16x32xi32>
    %c1_i32_12 = arith.constant 1 : i32
    %37 = vector.broadcast %c1_i32_12 : i32 to vector<16x32xi32>
    %38 = arith.andi %5, %37 : vector<16x32xi32>
    %c1_i32_13 = arith.constant 1 : i32
    %39 = vector.broadcast %c1_i32_13 : i32 to vector<16x32xi32>
    %40 = arith.cmpi eq, %38, %39 : vector<16x32xi32>
    %41 = arith.andi %32, %36 : vector<16x32xi1>
    %42 = arith.andi %41, %40 : vector<16x32xi1>
    %43 = arith.andi %32, %36 : vector<16x32xi1>
    %cst = arith.constant dense<true> : vector<16x32xi1>
    %44 = arith.xori %40, %cst : vector<16x32xi1>
    %45 = arith.andi %43, %44 : vector<16x32xi1>
    %cst_14 = arith.constant dense<true> : vector<16x32xi1>
    %46 = arith.xori %36, %cst_14 : vector<16x32xi1>
    %47 = arith.andi %32, %46 : vector<16x32xi1>
    %48 = arith.andi %47, %40 : vector<16x32xi1>
    %cst_15 = arith.constant dense<true> : vector<16x32xi1>
    %49 = arith.xori %36, %cst_15 : vector<16x32xi1>
    %50 = arith.andi %32, %49 : vector<16x32xi1>
    %cst_16 = arith.constant dense<true> : vector<16x32xi1>
    %51 = arith.xori %40, %cst_16 : vector<16x32xi1>
    %52 = arith.andi %50, %51 : vector<16x32xi1>
    %53 = arith.mulf %0, %1 : f32
    %54 = vector.broadcast %53 : f32 to vector<16x32xf32>
    %55 = arith.mulf %54, %3 : vector<16x32xf32>
    %c1_i32_17 = arith.constant 1 : i32
    %56 = tpu.dynamic_rotate %2 by %c1_i32_17 dim 0 : vector<16x32xf32>, i32 -> vector<16x32xf32>
    %c15_i32 = arith.constant 15 : i32
    %57 = tpu.dynamic_rotate %2 by %c15_i32 dim 0 : vector<16x32xf32>, i32 -> vector<16x32xf32>
    %c1_i32_18 = arith.constant 1 : i32
    %58 = tpu.dynamic_rotate %2 by %c1_i32_18 dim 1 : vector<16x32xf32>, i32 -> vector<16x32xf32>
    %c31_i32 = arith.constant 31 : i32
    %59 = tpu.dynamic_rotate %2 by %c31_i32 dim 1 : vector<16x32xf32>, i32 -> vector<16x32xf32>
    %60 = arith.addf %56, %57 : vector<16x32xf32>
    %61 = arith.addf %60, %58 : vector<16x32xf32>
    %62 = arith.addf %61, %59 : vector<16x32xf32>
    %cst_19 = arith.constant 2.500000e-01 : f32
    %63 = vector.broadcast %cst_19 : f32 to vector<16x32xf32>
    %64 = arith.mulf %63, %62 : vector<16x32xf32>
    %65 = arith.subf %64, %2 : vector<16x32xf32>
    %66 = vector.broadcast %0 : f32 to vector<16x32xf32>
    %67 = arith.mulf %66, %65 : vector<16x32xf32>
    %68 = arith.subf %67, %55 : vector<16x32xf32>
    %cst_20 = arith.constant 0.000000e+00 : f32
    %69 = vector.broadcast %cst_20 : f32 to vector<16x32xf32>
    %70 = arith.select %42, %68, %69 : vector<16x32xi1>, vector<16x32xf32>
    %71 = arith.addf %2, %70 : vector<16x32xf32>
    %c1_i32_21 = arith.constant 1 : i32
    %72 = tpu.dynamic_rotate %71 by %c1_i32_21 dim 0 : vector<16x32xf32>, i32 -> vector<16x32xf32>
    %c15_i32_22 = arith.constant 15 : i32
    %73 = tpu.dynamic_rotate %71 by %c15_i32_22 dim 0 : vector<16x32xf32>, i32 -> vector<16x32xf32>
    %c1_i32_23 = arith.constant 1 : i32
    %74 = tpu.dynamic_rotate %71 by %c1_i32_23 dim 1 : vector<16x32xf32>, i32 -> vector<16x32xf32>
    %c31_i32_24 = arith.constant 31 : i32
    %75 = tpu.dynamic_rotate %71 by %c31_i32_24 dim 1 : vector<16x32xf32>, i32 -> vector<16x32xf32>
    %76 = arith.addf %72, %73 : vector<16x32xf32>
    %77 = arith.addf %76, %74 : vector<16x32xf32>
    %78 = arith.addf %77, %75 : vector<16x32xf32>
    %cst_25 = arith.constant 2.500000e-01 : f32
    %79 = vector.broadcast %cst_25 : f32 to vector<16x32xf32>
    %80 = arith.mulf %79, %78 : vector<16x32xf32>
    %81 = arith.subf %80, %71 : vector<16x32xf32>
    %82 = vector.broadcast %0 : f32 to vector<16x32xf32>
    %83 = arith.mulf %82, %81 : vector<16x32xf32>
    %84 = arith.subf %83, %55 : vector<16x32xf32>
    %cst_26 = arith.constant 0.000000e+00 : f32
    %85 = vector.broadcast %cst_26 : f32 to vector<16x32xf32>
    %86 = arith.select %45, %84, %85 : vector<16x32xi1>, vector<16x32xf32>
    %87 = arith.addf %71, %86 : vector<16x32xf32>
    %c1_i32_27 = arith.constant 1 : i32
    %88 = tpu.dynamic_rotate %87 by %c1_i32_27 dim 0 : vector<16x32xf32>, i32 -> vector<16x32xf32>
    %c15_i32_28 = arith.constant 15 : i32
    %89 = tpu.dynamic_rotate %87 by %c15_i32_28 dim 0 : vector<16x32xf32>, i32 -> vector<16x32xf32>
    %c1_i32_29 = arith.constant 1 : i32
    %90 = tpu.dynamic_rotate %87 by %c1_i32_29 dim 1 : vector<16x32xf32>, i32 -> vector<16x32xf32>
    %c31_i32_30 = arith.constant 31 : i32
    %91 = tpu.dynamic_rotate %87 by %c31_i32_30 dim 1 : vector<16x32xf32>, i32 -> vector<16x32xf32>
    %92 = arith.addf %88, %89 : vector<16x32xf32>
    %93 = arith.addf %92, %90 : vector<16x32xf32>
    %94 = arith.addf %93, %91 : vector<16x32xf32>
    %cst_31 = arith.constant 2.500000e-01 : f32
    %95 = vector.broadcast %cst_31 : f32 to vector<16x32xf32>
    %96 = arith.mulf %95, %94 : vector<16x32xf32>
    %97 = arith.subf %96, %87 : vector<16x32xf32>
    %98 = vector.broadcast %0 : f32 to vector<16x32xf32>
    %99 = arith.mulf %98, %97 : vector<16x32xf32>
    %100 = arith.subf %99, %55 : vector<16x32xf32>
    %cst_32 = arith.constant 0.000000e+00 : f32
    %101 = vector.broadcast %cst_32 : f32 to vector<16x32xf32>
    %102 = arith.select %48, %100, %101 : vector<16x32xi1>, vector<16x32xf32>
    %103 = arith.addf %87, %102 : vector<16x32xf32>
    %c1_i32_33 = arith.constant 1 : i32
    %104 = tpu.dynamic_rotate %103 by %c1_i32_33 dim 0 : vector<16x32xf32>, i32 -> vector<16x32xf32>
    %c15_i32_34 = arith.constant 15 : i32
    %105 = tpu.dynamic_rotate %103 by %c15_i32_34 dim 0 : vector<16x32xf32>, i32 -> vector<16x32xf32>
    %c1_i32_35 = arith.constant 1 : i32
    %106 = tpu.dynamic_rotate %103 by %c1_i32_35 dim 1 : vector<16x32xf32>, i32 -> vector<16x32xf32>
    %c31_i32_36 = arith.constant 31 : i32
    %107 = tpu.dynamic_rotate %103 by %c31_i32_36 dim 1 : vector<16x32xf32>, i32 -> vector<16x32xf32>
    %108 = arith.addf %104, %105 : vector<16x32xf32>
    %109 = arith.addf %108, %106 : vector<16x32xf32>
    %110 = arith.addf %109, %107 : vector<16x32xf32>
    %cst_37 = arith.constant 2.500000e-01 : f32
    %111 = vector.broadcast %cst_37 : f32 to vector<16x32xf32>
    %112 = arith.mulf %111, %110 : vector<16x32xf32>
    %113 = arith.subf %112, %103 : vector<16x32xf32>
    %114 = vector.broadcast %0 : f32 to vector<16x32xf32>
    %115 = arith.mulf %114, %113 : vector<16x32xf32>
    %116 = arith.subf %115, %55 : vector<16x32xf32>
    %cst_38 = arith.constant 0.000000e+00 : f32
    %117 = vector.broadcast %cst_38 : f32 to vector<16x32xf32>
    %118 = arith.select %52, %116, %117 : vector<16x32xi1>, vector<16x32xf32>
    %119 = arith.addf %103, %118 : vector<16x32xf32>
    %c15_i32_39 = arith.constant 15 : i32
    %120 = vector.broadcast %c15_i32_39 : i32 to vector<16x32xi32>
    %121 = arith.cmpi eq, %21, %120 : vector<16x32xi32>
    %cst_40 = arith.constant 0.000000e+00 : f32
    %122 = vector.broadcast %cst_40 : f32 to vector<16x32xf32>
    %123 = arith.select %121, %122, %119 : vector<16x32xi1>, vector<16x32xf32>
    %c0_i32_41 = arith.constant 0 : i32
    %124 = vector.broadcast %c0_i32_41 : i32 to vector<16x32xi32>
    %125 = arith.cmpi eq, %4, %124 : vector<16x32xi32>
    %126 = vector.extract_strided_slice %123 {offsets = [1, 0], sizes = [1, 32], strides = [1, 1]} : vector<16x32xf32> to vector<1x32xf32>
    %127 = vector.shape_cast %126 : vector<1x32xf32> to vector<1x32xf32>
    %128 = vector.broadcast %127 : vector<1x32xf32> to vector<16x32xf32>
    %129 = arith.select %125, %128, %123 : vector<16x32xi1>, vector<16x32xf32>
    %c31_i32_42 = arith.constant 31 : i32
    %130 = tpu.dynamic_rotate %129 by %c31_i32_42 dim 1 : vector<16x32xf32>, i32 -> vector<16x32xf32>
    %c0_i32_43 = arith.constant 0 : i32
    %131 = vector.broadcast %c0_i32_43 : i32 to vector<16x32xi32>
    %132 = arith.cmpi eq, %21, %131 : vector<16x32xi32>
    %133 = arith.select %132, %130, %129 : vector<16x32xi1>, vector<16x32xf32>
    %c15_i32_44 = arith.constant 15 : i32
    %134 = vector.broadcast %c15_i32_44 : i32 to vector<16x32xi32>
    %135 = arith.cmpi eq, %4, %134 : vector<16x32xi32>
    %136 = vector.extract_strided_slice %133 {offsets = [14, 0], sizes = [1, 32], strides = [1, 1]} : vector<16x32xf32> to vector<1x32xf32>
    %137 = vector.shape_cast %136 : vector<1x32xf32> to vector<1x32xf32>
    %138 = vector.broadcast %137 : vector<1x32xf32> to vector<16x32xf32>
    %139 = arith.select %135, %138, %133 : vector<16x32xi1>, vector<16x32xf32>
    %c0_45 = arith.constant 0 : index
    %c0_46 = arith.constant 0 : index
    %140 = vector.load %arg4[%c0_45, %c0_46] : memref<16x32xf32, #tpu.memory_space<vmem>>, vector<16x32xf32>
    tpu.vector_store %arg4[%c0_45, %c0_46], %139 {strides = array<i32>} : memref<16x32xf32, #tpu.memory_space<vmem>>, vector<16x32xf32>,
    return
  }
  func.func @transform_0(%arg0: i32) -> i32 {
    %c0_i32 = arith.constant 0 : i32
    %c0_i32_0 = arith.constant 0 : i32
    return %c0_i32 : i32
  }
  func.func @transform_1(%arg0: i32) -> (i32, i32) {
    %c0_i32 = arith.constant 0 : i32
    %c0_i32_0 = arith.constant 0 : i32
    return %c0_i32, %arg0 : i32, i32
  }
  func.func @transform_2(%arg0: i32) -> (i32, i32) {
    %c0_i32 = arith.constant 0 : i32
    %c0_i32_0 = arith.constant 0 : i32
    return %c0_i32, %arg0 : i32, i32
  }
  func.func @transform_3(%arg0: i32) -> (i32, i32) {
    %c0_i32 = arith.constant 0 : i32
    %c0_i32_0 = arith.constant 0 : i32
    return %c0_i32, %arg0 : i32, i32
  }
}

</mosaic_0001>

<llo_original>
// kernel: tpu_custom_call.1
$region0: #{tpu_custom_call.1}
  #allocation0 [shape = 'u32[]', space=smem, size = 0x4, offset = 0x4, fixed_abs, tag = 'smem constant byte address 0x4 - core index']
  #allocation1 [shape = 'u32[144,128]{1,0:T(1,128)}', space=vmem, size = 0x12000, scoped, tag = 'internal scratch']
  %s0 = inlined_call_operand.vmem [shape: f32[2], index: 0, kind: input, shape index: {}]
  %s1 = inlined_call_operand.vmem [shape: f32[16,32], index: 1, kind: input, shape index: {}]
  %s2 = inlined_call_operand.hbm [shape: f32[16,32], index: 2, kind: input, shape index: {}, may-alias: {2,3}]
  %s3 = inlined_call_operand.hbm [shape: f32[16,32], index: 3, kind: output, shape index: {}, may-alias: {2,3}]
  %s4 = sld [smem:[#allocation0]]
  $region30: #{tpu_custom_call.1} parent=0
    _
  %s6 = ssub.s32 1, %s4
  %s7 = scalar_select 0, %s6, %s4
  $region1: #{tpu_custom_call.1} parent=0
    #allocation2 [shape = 'u8[512]{0}', space=smem, size = 0x200, scoped, tag = 'input window, operand 0, single buffered']
    #allocation3 [shape = 's32[1]{0}', space=sflag, size = 0x4, scoped, tag = 'scoped memory for tpu_custom_call.1']
    #allocation4 [shape = 's32[1]{0}', space=sflag, size = 0x4, scoped, tag = 'scoped memory for tpu_custom_call.1']
    #allocation5 [shape = 's32[1]{0}', space=sflag, size = 0x4, scoped, tag = 'scoped memory for tpu_custom_call.1']
    #allocation6 [shape = 'u8[8192]{0}', space=vmem, size = 0x2000, scoped, tag = 'input window, operand 2, single buffered']
    #allocation7 [shape = 'u8[8192]{0}', space=vmem, size = 0x2000, scoped, tag = 'output window, operand 0, single buffered']
    %8 = vsyncpa [#allocation5], 0
    %9 = vsyncpa [#allocation3], 0
    %10 = vsyncpa [#allocation4], 0
    // Predicated region
    $region2: #{tpu_custom_call.1} parent=1 // pred_check
      _
    $region3: #{tpu_custom_call.1} parent=1 // pred_check_branch
      %12 = sbr.rel (0) target = $region5
    $region4: #{tpu_custom_call.1} parent=1 // pred_region
      %s14 = ssub.s32 16, 16
      %15 = vsyncadd [#allocation5], %s14
      %s17 = sshll.u32 %s0, 4
      %s18 = int_to_ptr.vmem [resolvable:$true] %s17
      %20 = dma.vmem_to_smem %s18, 16, [#allocation2], [#allocation5]
    $region5: #{tpu_custom_call.1} parent=1 // pred_fallthru
      _
    // Predicated region
    $region6: #{tpu_custom_call.1} parent=1 // pred_check
      _
    $region7: #{tpu_custom_call.1} parent=1 // pred_check_branch
      %22 = sbr.rel (0) target = $region9
    $region8: #{tpu_custom_call.1} parent=1 // pred_region
      _
    $region9: #{tpu_custom_call.1} parent=1 // pred_fallthru
      _
    // Predicated region
    $region10: #{tpu_custom_call.1} parent=1 // pred_check
      _
    $region11: #{tpu_custom_call.1} parent=1 // pred_check_branch
      %24 = sbr.rel (0) target = $region13
    $region12: #{tpu_custom_call.1} parent=1 // pred_region
      %s26 = ssub.s32 256, 256
      %27 = vsyncadd [#allocation3], %s26
      %s28 = sshll.u32 [#allocation6], 4
      %s29 = int_to_ptr.vmem [resolvable:$true] %s28
      %34 = dma.hbm_to_vmem [thread:$0]  %s2, 256, %s29, [#allocation3], 128, 128, 8
    $region13: #{tpu_custom_call.1} parent=1 // pred_fallthru
      _
    // Predicated region
    $region14: #{tpu_custom_call.1} parent=1 // pred_check
      _
    $region15: #{tpu_custom_call.1} parent=1 // pred_check_branch
      %36 = sbr.rel (0) target = $region17
    $region16: #{tpu_custom_call.1} parent=1 // pred_region
      %37 = dma.done [#allocation5], 16
    $region17: #{tpu_custom_call.1} parent=1 // pred_fallthru
      _
    // Predicated region
    $region18: #{tpu_custom_call.1} parent=1 // pred_check
      _
    $region19: #{tpu_custom_call.1} parent=1 // pred_check_branch
      %39 = sbr.rel (0) target = $region21
    $region20: #{tpu_custom_call.1} parent=1 // pred_region
      %40 = dma.done [#allocation3], 256
    $region21: #{tpu_custom_call.1} parent=1 // pred_fallthru
      _
    %41 = sfence
    %s42 = sld [smem:[#allocation2]]
    %s43 = sld [smem:[#allocation2 + $0x1]]
    %v44 = vld [vmem:[#allocation6] sm:$0xff]
    %v45 = vld [vmem:[#allocation6 + $0x8] sm:$0xff]
    %v46 = vld [vmem:[%s1] sm:$0xff]
    %v47 = vld [vmem:[%s1 + $0x8] sm:$0xff]
    %v48 = vlaneseq
    %v49 = vshrl.u32 %v48, 7
    %v50 = vadd.s32 %v49, 8
    %v51 = vlaneseq
    %v52 = vand.u32 %v51, 127
    %vm53 = vcmp.lt.s32.totalorder %v52, 0
    %v54 = vsub.s32 0, %v52
    %v55 = vsel %vm53, %v54, %v52
    %v56 = vshrl.u32 %v55, 4
    %v57 = vand.u32 %v55, 15
    %v58 = vsub.s32 0, %v57
    %v59 = vsel %vm53, %v58, %v57
    %vm60 = vcmp.ne.s32.totalorder %v59, 0
    %vm61 = vcmp.lt.s32.totalorder %v59, 0
    %vm62 = vmand %vm61, %vm60
    %v63 = vadd.s32 %v59, 16
    %v64 = vsel %vm62, %v63, %v59
    %vm65 = vcmp.ge.s32.totalorder %v49, 1
    %vm66 = vcmp.ge.s32.totalorder %v50, 1
    %vm67 = vcmp.le.s32.totalorder %v49, 14
    %vm68 = vcmp.le.s32.totalorder %v50, 14
    %vm69 = vmand %vm65, %vm67
    %vm70 = vmand %vm66, %vm68
    %vm71 = vcmp.ge.s32.totalorder %v64, 1
    %vm72 = vmand %vm69, %vm71
    %vm73 = vmand %vm70, %vm71
    %vm74 = vcmp.le.s32.totalorder %v64, 14
    %vm75 = vmand %vm72, %vm74
    %vm76 = vmand %vm73, %vm74
    %v77 = vand.u32 %v49, 1
    %v78 = vand.u32 %v50, 1
    %vm79 = vcmp.eq.s32.totalorder %v77, 1
    %vm80 = vcmp.eq.s32.totalorder %v78, 1
    %v81 = vand.u32 %v52, 1
    %vm82 = vcmp.eq.s32.totalorder %v81, 1
    %vm83 = vmand %vm75, %vm79
    %vm84 = vmand %vm76, %vm80
    %vm85 = vmand %vm83, %vm82
    %vm86 = vmand %vm84, %vm82
    %vm87 = vmxor %vm82, 1
    %vm88 = vmand %vm83, %vm87
    %vm89 = vmand %vm84, %vm87
    %vm90 = vmxor %vm79, 1
    %vm91 = vmxor %vm80, 1
    %vm92 = vmand %vm75, %vm90
    %vm93 = vmand %vm76, %vm91
    %vm94 = vmand %vm92, %vm82
    %vm95 = vmand %vm93, %vm82
    %vm96 = vmand %vm92, %vm87
    %vm97 = vmand %vm93, %vm87
    %s98 = smul.f32 %s42, %s43
    %v99 = vstv %s98
    %v100 = vmul.f32 %v99, %v46
    %v101 = vmul.f32 %v99, %v47
    %v102 = vrot.slane %v44, 7
    %v103 = vrot.slane %v45, 7
    %vm104 = vcmp.lt.s32.totalorder %v49, 1
    %v105 = vsel %vm104, %v102, %v103
    %v106 = vsel %vm104, %v103, %v102
    %v107 = vrot.slane %v44, 1
    %v108 = vrot.slane %v45, 1
    %vm109 = vcmp.lt.s32.totalorder %v49, 7
    %v110 = vsel %vm109, %v107, %v108
    %v111 = vsel %vm109, %v108, %v107
    %vm112 = vcmask 1047808
    %113 = vrot.lane.b32.xlu0 %v44, 32
    %v114 = vpop.permute.xlu0 %113
    %v115 = vsel %vm112, %v114, %v44
    %116 = vrot.lane.b32.xlu0 %v45, 32
    %v117 = vpop.permute.xlu0 %116
    %v118 = vsel %vm112, %v117, %v45
    %119 = vrot.lane.b32.xlu0 %v115, 32
    %v120 = vpop.permute.xlu0 %119
    %121 = vrot.lane.b32.xlu0 %v118, 32
    %v122 = vpop.permute.xlu0 %121
    %v123 = vsel %vm112, %v120, %v44
    %v124 = vsel %vm112, %v122, %v45
    %v125 = vadd.f32 %v106, %v110
    %v126 = vadd.f32 %v105, %v111
    %129 = vrot.lane.b32.xlu0 %v123, 97
    %v130 = vpop.permute.xlu0 %129
    %131 = vrot.lane.b32.xlu0 %v124, 97
    %v132 = vpop.permute.xlu0 %131
    %v135 = vadd.f32 %v125, %v130
    %v136 = vadd.f32 %v126, %v132
    %137 = vrot.lane.b32.xlu0 %v123, 127
    %v138 = vpop.permute.xlu0 %137
    %139 = vrot.lane.b32.xlu0 %v124, 127
    %v140 = vpop.permute.xlu0 %139
    %v143 = vadd.f32 %v135, %v138
    %v144 = vadd.f32 %v136, %v140
    %v145 = vmul.f32 %v143, 0.25
    %v146 = vmul.f32 %v144, 0.25
    %v147 = vsub.f32 %v145, %v44
    %v148 = vsub.f32 %v146, %v45
    %v149 = vstv %s42
    %v150 = vmul.f32 %v149, %v147
    %v151 = vmul.f32 %v149, %v148
    %v152 = vsub.f32 %v150, %v100
    %v153 = vsub.f32 %v151, %v101
    %v154 = vsel %vm85, %v152, 0.0
    %v155 = vsel %vm86, %v153, 0.0
    %v156 = vadd.f32 %v44, %v154
    %v157 = vadd.f32 %v45, %v155
    %v158 = vrot.slane %v156, 7
    %v159 = vrot.slane %v157, 7
    %v160 = vsel %vm104, %v158, %v159
    %v161 = vsel %vm104, %v159, %v158
    %v162 = vrot.slane %v156, 1
    %v163 = vrot.slane %v157, 1
    %v164 = vsel %vm109, %v162, %v163
    %v165 = vsel %vm109, %v163, %v162
    %166 = vrot.lane.b32.xlu0 %v156, 32
    %v167 = vpop.permute.xlu0 %166
    %v168 = vsel %vm112, %v167, %v156
    %169 = vrot.lane.b32.xlu0 %v157, 32
    %v170 = vpop.permute.xlu0 %169
    %v171 = vsel %vm112, %v170, %v157
    %172 = vrot.lane.b32.xlu0 %v168, 32
    %v173 = vpop.permute.xlu0 %172
    %174 = vrot.lane.b32.xlu0 %v171, 32
    %v175 = vpop.permute.xlu0 %174
    %v176 = vsel %vm112, %v173, %v156
    %v177 = vsel %vm112, %v175, %v157
    %v178 = vadd.f32 %v161, %v164
    %v179 = vadd.f32 %v160, %v165
    %182 = vrot.lane.b32.xlu0 %v176, 97
    %v183 = vpop.permute.xlu0 %182
    %184 = vrot.lane.b32.xlu0 %v177, 97
    %v185 = vpop.permute.xlu0 %184
    %v188 = vadd.f32 %v178, %v183
    %v189 = vadd.f32 %v179, %v185
    %190 = vrot.lane.b32.xlu0 %v176, 127
    %v191 = vpop.permute.xlu0 %190
    %192 = vrot.lane.b32.xlu0 %v177, 127
    %v193 = vpop.permute.xlu0 %192
    %v196 = vadd.f32 %v188, %v191
    %v197 = vadd.f32 %v189, %v193
    %v198 = vmul.f32 %v196, 0.25
    %v199 = vmul.f32 %v197, 0.25
    %v200 = vsub.f32 %v198, %v156
    %v201 = vsub.f32 %v199, %v157
    %v202 = vmul.f32 %v149, %v200
    %v203 = vmul.f32 %v149, %v201
    %v204 = vsub.f32 %v202, %v100
    %v205 = vsub.f32 %v203, %v101
    %v206 = vsel %vm88, %v204, 0.0
    %v207 = vsel %vm89, %v205, 0.0
    %v208 = vadd.f32 %v156, %v206
    %v209 = vadd.f32 %v157, %v207
    %v210 = vrot.slane %v208, 7
    %v211 = vrot.slane %v209, 7
    %v212 = vsel %vm104, %v210, %v211
    %v213 = vsel %vm104, %v211, %v210
    %v214 = vrot.slane %v208, 1
    %v215 = vrot.slane %v209, 1
    %v216 = vsel %vm109, %v214, %v215
    %v217 = vsel %vm109, %v215, %v214
    %218 = vrot.lane.b32.xlu0 %v208, 32
    %v219 = vpop.permute.xlu0 %218
    %v220 = vsel %vm112, %v219, %v208
    %221 = vrot.lane.b32.xlu0 %v209, 32
    %v222 = vpop.permute.xlu0 %221
    %v223 = vsel %vm112, %v222, %v209
    %224 = vrot.lane.b32.xlu0 %v220, 32
    %v225 = vpop.permute.xlu0 %224
    %226 = vrot.lane.b32.xlu0 %v223, 32
    %v227 = vpop.permute.xlu0 %226
    %v228 = vsel %vm112, %v225, %v208
    %v229 = vsel %vm112, %v227, %v209
    %v230 = vadd.f32 %v213, %v216
    %v231 = vadd.f32 %v212, %v217
    %234 = vrot.lane.b32.xlu0 %v228, 97
    %v235 = vpop.permute.xlu0 %234
    %236 = vrot.lane.b32.xlu0 %v229, 97
    %v237 = vpop.permute.xlu0 %236
    %v240 = vadd.f32 %v230, %v235
    %v241 = vadd.f32 %v231, %v237
    %242 = vrot.lane.b32.xlu0 %v228, 127
    %v243 = vpop.permute.xlu0 %242
    %244 = vrot.lane.b32.xlu0 %v229, 127
    %v245 = vpop.permute.xlu0 %244
    %v248 = vadd.f32 %v240, %v243
    %v249 = vadd.f32 %v241, %v245
    %v250 = vmul.f32 %v248, 0.25
    %v251 = vmul.f32 %v249, 0.25
    %v252 = vsub.f32 %v250, %v208
    %v253 = vsub.f32 %v251, %v209
    %v254 = vmul.f32 %v149, %v252
    %v255 = vmul.f32 %v149, %v253
    %v256 = vsub.f32 %v254, %v100
    %v257 = vsub.f32 %v255, %v101
    %v258 = vsel %vm94, %v256, 0.0
    %v259 = vsel %vm95, %v257, 0.0
    %v260 = vadd.f32 %v208, %v258
    %v261 = vadd.f32 %v209, %v259
    %v262 = vrot.slane %v260, 7
    %v263 = vrot.slane %v261, 7
    %v264 = vsel %vm104, %v262, %v263
    %v265 = vsel %vm104, %v263, %v262
    %v266 = vrot.slane %v260, 1
    %v267 = vrot.slane %v261, 1
    %v268 = vsel %vm109, %v266, %v267
    %v269 = vsel %vm109, %v267, %v266
    %270 = vrot.lane.b32.xlu0 %v260, 32
    %v271 = vpop.permute.xlu0 %270
    %v272 = vsel %vm112, %v271, %v260
    %273 = vrot.lane.b32.xlu0 %v261, 32
    %v274 = vpop.permute.xlu0 %273
    %v275 = vsel %vm112, %v274, %v261
    %276 = vrot.lane.b32.xlu0 %v272, 32
    %v277 = vpop.permute.xlu0 %276
    %278 = vrot.lane.b32.xlu0 %v275, 32
    %v279 = vpop.permute.xlu0 %278
    %v280 = vsel %vm112, %v277, %v260
    %v281 = vsel %vm112, %v279, %v261
    %v282 = vadd.f32 %v265, %v268
    %v283 = vadd.f32 %v264, %v269
    %286 = vrot.lane.b32.xlu0 %v280, 97
    %v287 = vpop.permute.xlu0 %286
    %288 = vrot.lane.b32.xlu0 %v281, 97
    %v289 = vpop.permute.xlu0 %288
    %v292 = vadd.f32 %v282, %v287
    %v293 = vadd.f32 %v283, %v289
    %294 = vrot.lane.b32.xlu0 %v280, 127
    %v295 = vpop.permute.xlu0 %294
    %296 = vrot.lane.b32.xlu0 %v281, 127
    %v297 = vpop.permute.xlu0 %296
    %v300 = vadd.f32 %v292, %v295
    %v301 = vadd.f32 %v293, %v297
    %v302 = vmul.f32 %v300, 0.25
    %v303 = vmul.f32 %v301, 0.25
    %v304 = vsub.f32 %v302, %v260
    %v305 = vsub.f32 %v303, %v261
    %v306 = vmul.f32 %v149, %v304
    %v307 = vmul.f32 %v149, %v305
    %v308 = vsub.f32 %v306, %v100
    %v309 = vsub.f32 %v307, %v101
    %v310 = vsel %vm96, %v308, 0.0
    %v311 = vsel %vm97, %v309, 0.0
    %v312 = vadd.f32 %v260, %v310
    %v313 = vadd.f32 %v261, %v311
    %vm314 = vcmp.eq.s32.totalorder %v64, 15
    %v315 = vsel %vm314, 0.0, %v312
    %v316 = vsel %vm314, 0.0, %v313
    %vm317 = vcmp.eq.s32.totalorder %v49, 0
    %vm318 = vcmp.eq.s32.totalorder %v50, 0
    %v319 = vlaneseq
    %v320 = vshrl.u32 %v319, 7
    %v321 = vsub.s32 1, %v320
    %v322 = vrot.slane %v315, %v321
    %v323 = vsel %vm317, %v322, %v315
    %v324 = vsel %vm318, %v322, %v316
    %325 = vrot.lane.b32.xlu0 %v323, 32
    %v326 = vpop.permute.xlu0 %325
    %v327 = vsel %vm112, %v326, %v323
    %328 = vrot.lane.b32.xlu0 %v324, 32
    %v329 = vpop.permute.xlu0 %328
    %v330 = vsel %vm112, %v329, %v324
    %331 = vrot.lane.b32.xlu0 %v327, 32
    %v332 = vpop.permute.xlu0 %331
    %333 = vrot.lane.b32.xlu0 %v330, 32
    %v334 = vpop.permute.xlu0 %333
    %v335 = vsel %vm112, %v332, %v323
    %v336 = vsel %vm112, %v334, %v324
    %vm337 = vcmp.eq.s32.totalorder %v64, 0
    %340 = vrot.lane.b32.xlu0 %v335, 127
    %v341 = vpop.permute.xlu0 %340
    %342 = vrot.lane.b32.xlu0 %v336, 127
    %v343 = vpop.permute.xlu0 %342
    %v346 = vsel %vm337, %v341, %v323
    %v347 = vsel %vm337, %v343, %v324
    %vm348 = vcmp.eq.s32.totalorder %v49, 15
    %vm349 = vcmp.eq.s32.totalorder %v50, 15
    %v350 = vlaneseq
    %v351 = vshrl.u32 %v350, 7
    %v352 = vsub.s32 6, %v351
    %v353 = vrot.slane %v347, %v352
    %v354 = vsel %vm348, %v353, %v346
    %v355 = vsel %vm349, %v353, %v347
    %vm356 = vcmask 261120
    %357 = vst.msk [vmem:[#allocation7] sm:$0xff] %vm356, %v354
    %358 = vst.msk [vmem:[#allocation7 + $0x8] sm:$0xff] %vm356, %v355
    // Predicated region
    $region22: #{tpu_custom_call.1} parent=1 // pred_check
      _
    $region23: #{tpu_custom_call.1} parent=1 // pred_check_branch
      %360 = sbr.rel (0) target = $region25
    $region24: #{tpu_custom_call.1} parent=1 // pred_region
      %s362 = ssub.s32 256, 256
      %363 = vsyncadd [#allocation4], %s362
      %s364 = sshll.u32 [#allocation7], 4
      %s365 = int_to_ptr.vmem [resolvable:$true] %s364
      %370 = dma.vmem_to_hbm [thread:$0]  %s365, 256, %s3, [#allocation4], 128, 128, 8
    $region25: #{tpu_custom_call.1} parent=1 // pred_fallthru
      _
    // Predicated region
    $region26: #{tpu_custom_call.1} parent=1 // pred_check
      _
    $region27: #{tpu_custom_call.1} parent=1 // pred_check_branch
      %372 = sbr.rel (0) target = $region29
    $region28: #{tpu_custom_call.1} parent=1 // pred_region
      %373 = dma.done [#allocation4], 256
    $region29: #{tpu_custom_call.1} parent=1 // pred_fallthru
      _
    %374 = vsyncpa [#allocation3], 1
    %375 = vsyncpa [#allocation4], 1
    %376 = vsyncpa [#allocation5], 1

</llo_original>
